<compile_context>
chip_gen: v7x
topology: tpu7x:2x2x1
jax: 0.10.0
libtpu: 0.0.40
codegen_flags: <defaults>
</compile_context>

<pallas_src>
import functools

import jax
import jax.numpy as jnp
from jax.experimental import pallas as pl
from jax.experimental.pallas import tpu as pltpu


# ----------------------------------------------------------------------------
# Fused Pallas kernel: expand(1x1) -> depthwise(3x3) -> project(1x1) + residual
# ----------------------------------------------------------------------------
def _fused_inverted_residual_kernel(*refs, W, expand, use_res):
    if expand:
        x_ref, we_ref, be_ref, mt_ref, bd_ref, wp_ref, bp_ref, o_ref = refs
    else:
        x_ref, mt_ref, bd_ref, wp_ref, bp_ref, o_ref = refs

    x = x_ref[...].astype(jnp.float32)                 # (Cin, H*W), lane-dense
    HW = x.shape[-1]

    # ---- 1x1 expand conv (BN scale folded into weight) + bias + ReLU6 ----
    if expand:
        h = jnp.dot(we_ref[...], x.astype(we_ref.dtype),
                    preferred_element_type=jnp.float32)
        h = jnp.clip(h + be_ref[...], 0.0, 6.0)        # (hidden, H*W), f32
    else:
        h = x                                          # hidden == Cin

    # ---- 3x3 depthwise conv (stride 1, pad 1), BN scale folded into taps ----
    # mt_ref[k] = (dw_weight[:, k] * bn_scale)[:, None] * boundary_mask[k]
    # so each tap is: one lane rotation (XLU slot, off the VALU) + one
    # multiply + one add.  The boundary mask also kills the roll wrap-around.
    acc = jnp.zeros(h.shape, jnp.float32)
    k = 0
    for dy in (-1, 0, 1):
        for dx in (-1, 0, 1):
            off = dy * W + dx
            shifted = pltpu.roll(h, (-off) % HW, axis=1) if off else h
            acc = acc + shifted * mt_ref[k]
            k += 1
    g = jnp.clip(acc + bd_ref[...], 0.0, 6.0)          # (hidden, H*W), f32

    # ---- 1x1 project conv (BN scale folded) + bias (+ residual, in f32) ----
    y = jnp.dot(wp_ref[...], g.astype(wp_ref.dtype),
                preferred_element_type=jnp.float32)
    y = y + bp_ref[...]
    if use_res:
        y = y + x                                      # inp == oup
    o_ref[...] = y.astype(o_ref.dtype)


# ----------------------------------------------------------------------------
# Wrapper
# ----------------------------------------------------------------------------
def fold_bn(gamma, beta, mean, var, eps=1e-5):
    scale = gamma / jnp.sqrt(var + eps)
    bias = beta - mean * scale
    return scale, bias                                 # (C,), (C,)


def _boundary_masks(H, W):
    """(9, H*W) f32 masks: 1 where the shifted source pixel is inside the image."""
    pos = jnp.arange(H * W)
    row = pos // W
    col = pos % W
    rows = []
    for dy in (-1, 0, 1):
        for dx in (-1, 0, 1):
            valid = ((row + dy >= 0) & (row + dy < H) &
                     (col + dx >= 0) & (col + dx < W))
            rows.append(valid.astype(jnp.float32))
    return jnp.stack(rows)


def inverted_residual(x_nchw, params, *, inp, oup, stride, expand_ratio,
                      mxu_dtype=jnp.bfloat16):
    assert stride in (1, 2)
    # TODO(synk): stride=2 depthwise path and halo-aware spatial / channel
    # tiling for production sizes are not implemented (demo is stride=1).
    assert stride == 1, "only stride=1 implemented"
    use_res = (stride == 1) and (inp == oup)
    expand = expand_ratio != 1

    N, Cin, H, W = x_nchw.shape
    assert Cin == inp
    HW = H * W
    hidden = params["w_dw"].shape[-1]
    assert hidden == int(round(inp * expand_ratio))
    if not expand:
        assert hidden == inp, "expand_ratio==1 requires depthwise dim == inp"

    x3 = x_nchw.reshape(N, Cin, HW)                    # NCHW, spatial flat on lanes

    def col(v):                                        # (C,) -> (C, 1) f32 bias
        return v.reshape(-1, 1).astype(jnp.float32)

    def resident(shape):                               # weights resident in VMEM
        nd = len(shape)
        return pl.BlockSpec(shape, lambda n, _nd=nd: (0,) * _nd)

    args = [x3]
    # None (squeezed) leading batch dim: kernel ref is (Cin, HW).
    in_specs = [pl.BlockSpec((None, Cin, HW), lambda n: (n, 0, 0))]

    if expand:
        # Fold BN scale into the expand weight; only the bias stays in-kernel.
        w_exp_eff = (params["s_exp"][:, None] * params["w_exp"].T).astype(mxu_dtype)
        args += [w_exp_eff, col(params["b_exp"])]
        in_specs += [resident((hidden, Cin)), resident((hidden, 1))]

    # Depthwise: fold BN scale into the 9 taps and pre-multiply by the boundary
    # masks -> resident (9, hidden, HW) masked-tap slab (144 KB at demo size).
    # TODO(synk): at production sizes pass only the (9, HW) masks + (hidden, 9)
    # scaled taps and keep one mask multiply in-kernel instead.
    wd = params["w_dw"].reshape(9, hidden) * params["s_dw"][None, :]     # (9, hidden)
    masked_taps = (wd[:, :, None] *
                   _boundary_masks(H, W)[:, None, :]).astype(jnp.float32)
    args += [masked_taps, col(params["b_dw"])]
    in_specs += [resident((9, hidden, HW)), resident((hidden, 1))]

    w_proj_eff = (params["s_proj"][:, None] * params["w_proj"].T).astype(mxu_dtype)
    args += [w_proj_eff, col(params["b_proj"])]
    in_specs += [resident((oup, hidden)), resident((oup, 1))]

    kernel = functools.partial(_fused_inverted_residual_kernel,
                               W=W, expand=expand, use_res=use_res)

    out3 = pl.pallas_call(
        kernel,
        out_shape=jax.ShapeDtypeStruct((N, oup, HW), x_nchw.dtype),
        grid=(N,),
        in_specs=in_specs,
        out_specs=pl.BlockSpec((None, oup, HW), lambda n: (n, 0, 0)),
        compiler_params=pltpu.CompilerParams(
            dimension_semantics=("parallel",),
            vmem_limit_bytes=32 * 1024 * 1024),
    )(*args)
    return out3.reshape(N, oup, H, W)                  # already NCHW


# ----------------------------------------------------------------------------
# Pure-JAX reference (for correctness check)
# ----------------------------------------------------------------------------
def _ref_inverted_residual(x_nchw, params, *, inp, oup, stride, expand_ratio):
    x = jnp.transpose(x_nchw, (0, 2, 3, 1))
    dn = ("NHWC", "HWIO", "NHWC")
    h = x
    if expand_ratio != 1:
        w = params["w_exp"][None, None]                # (1,1,Cin,hidden)
        h = jax.lax.conv_general_dilated(h, w, (1, 1), "SAME",
                                         dimension_numbers=dn)
        h = jnp.clip(h * params["s_exp"] + params["b_exp"], 0.0, 6.0)
    hidden = h.shape[-1]
    w_dw = params["w_dw"].reshape(3, 3, 1, hidden)
    h = jax.lax.conv_general_dilated(h, w_dw, (stride, stride), "SAME",
                                     dimension_numbers=dn,
                                     feature_group_count=hidden)
    h = jnp.clip(h * params["s_dw"] + params["b_dw"], 0.0, 6.0)
    w_p = params["w_proj"][None, None]
    h = jax.lax.conv_general_dilated(h, w_p, (1, 1), "SAME",
                                     dimension_numbers=dn)
    h = h * params["s_proj"] + params["b_proj"]
    if stride == 1 and inp == oup:
        h = h + x
    return jnp.transpose(h, (0, 3, 1, 2))


# ----------------------------------------------------------------------------
# Main
# ----------------------------------------------------------------------------
if __name__ == "__main__":
    # Module config: InvertedResidual(inp=4, oup=4, stride=1, expand_ratio=4)
    inp, oup, stride, expand_ratio = 4, 4, 1, 4
    hidden = int(round(inp * expand_ratio))            # 16
    N, H, W = 2, 16, 16

    key = jax.random.PRNGKey(0)
    k_x, k_we, k_wd, k_wp = jax.random.split(key, 4)

    x = jax.random.normal(k_x, (N, inp, H, W), jnp.float32)   # NCHW input

    w_exp = 0.2 * jax.random.normal(k_we, (inp, hidden), jnp.float32)
    w_dw = 0.2 * jax.random.normal(k_wd, (3, 3, hidden), jnp.float32)
    w_proj = 0.2 * jax.random.normal(k_wp, (hidden, oup), jnp.float32)

    def bn_params(c, off):
        gamma = 1.0 + 0.05 * jnp.arange(c, dtype=jnp.float32)
        beta = 0.02 * jnp.arange(c, dtype=jnp.float32) - off
        mean = 0.01 * jnp.arange(c, dtype=jnp.float32)
        var = 1.0 + 0.03 * jnp.arange(c, dtype=jnp.float32)
        return fold_bn(gamma, beta, mean, var)

    s_exp, b_exp = bn_params(hidden, 0.1)
    s_dw, b_dw = bn_params(hidden, 0.2)
    s_proj, b_proj = bn_params(oup, 0.0)

    params = dict(w_exp=w_exp, s_exp=s_exp, b_exp=b_exp,
                  w_dw=w_dw, s_dw=s_dw, b_dw=b_dw,
                  w_proj=w_proj, s_proj=s_proj, b_proj=b_proj)

    ref = _ref_inverted_residual(x, params, inp=inp, oup=oup, stride=stride,
                                 expand_ratio=expand_ratio)

    # 1) f32 MXU operands: tight check of the fused-kernel semantics.
    run_f32 = jax.jit(functools.partial(
        inverted_residual, inp=inp, oup=oup, stride=stride,
        expand_ratio=expand_ratio, mxu_dtype=jnp.float32))
    out_f32 = jax.block_until_ready(run_f32(x, params))
    assert out_f32.shape == (N, oup, H, W)
    err_f32 = jnp.max(jnp.abs(out_f32 - ref))
    assert jnp.allclose(out_f32, ref, atol=1e-4, rtol=1e-4), f"f32 max err {err_f32}"

    # 2) bf16 MXU operands (recommended default on v6e/v7x): loose sanity check
    #    against the f32 reference (bf16 weight/activation rounding only).
    run_bf16 = jax.jit(functools.partial(
        inverted_residual, inp=inp, oup=oup, stride=stride,
        expand_ratio=expand_ratio, mxu_dtype=jnp.bfloat16))
    out_bf16 = jax.block_until_ready(run_bf16(x, params))
    err_bf16 = jnp.max(jnp.abs(out_bf16 - ref))
    assert jnp.allclose(out_bf16, ref, atol=0.15, rtol=0.05), f"bf16 max err {err_bf16}"

    print("KERNEL_OK")
</pallas_src>

<mosaic_0001>
module attributes {stable_mosaic.version = 11 : i64} {
  func.func @_fused_inverted_residual_kernel(%arg0: i32, %arg1: memref<1x4x256xf32, #tpu.memory_space<vmem>>, %arg2: memref<16x4xf32, #tpu.memory_space<vmem>>, %arg3: memref<16x1xf32, #tpu.memory_space<vmem>>, %arg4: memref<9x16x256xf32, #tpu.memory_space<vmem>>, %arg5: memref<16x1xf32, #tpu.memory_space<vmem>>, %arg6: memref<4x16xf32, #tpu.memory_space<vmem>>, %arg7: memref<4x1xf32, #tpu.memory_space<vmem>>, %arg8: memref<1x4x256xf32, #tpu.memory_space<vmem>>) attributes {dimension_semantics = [#tpu.dimension_semantics<parallel>], iteration_bounds = array<i64: 2>, scalar_prefetch = 0 : i64, scratch_operands = 0 : i64, tpu.core_type = #tpu.core_type<tc>, window_params = [{transform_indices = @transform_0, window_bounds = array<i64: 1, 4, 256>}, {pipeline_mode = #tpu.pipeline_mode<synchronous>, transform_indices = @transform_1, window_bounds = array<i64: 16, 4>}, {pipeline_mode = #tpu.pipeline_mode<synchronous>, transform_indices = @transform_2, window_bounds = array<i64: 16, 1>}, {pipeline_mode = #tpu.pipeline_mode<synchronous>, transform_indices = @transform_3, window_bounds = array<i64: 9, 16, 256>}, {pipeline_mode = #tpu.pipeline_mode<synchronous>, transform_indices = @transform_4, window_bounds = array<i64: 16, 1>}, {pipeline_mode = #tpu.pipeline_mode<synchronous>, transform_indices = @transform_5, window_bounds = array<i64: 4, 16>}, {pipeline_mode = #tpu.pipeline_mode<synchronous>, transform_indices = @transform_6, window_bounds = array<i64: 4, 1>}, {transform_indices = @transform_7, window_bounds = array<i64: 1, 4, 256>}]} {
    %c0 = arith.constant 0 : index
    %c0_0 = arith.constant 0 : index
    %c0_1 = arith.constant 0 : index
    %0 = vector.load %arg1[%c0, %c0_0, %c0_1] : memref<1x4x256xf32, #tpu.memory_space<vmem>>, vector<1x4x256xf32>
    %1 = vector.shape_cast %0 : vector<1x4x256xf32> to vector<4x256xf32>
    %c0_2 = arith.constant 0 : index
    %c0_3 = arith.constant 0 : index
    %2 = vector.load %arg2[%c0_2, %c0_3] : memref<16x4xf32, #tpu.memory_space<vmem>>, vector<16x4xf32>
    %cst = arith.constant dense<0.000000e+00> : vector<16x256xf32>
    %3 = tpu.matmul %2, %1, %cst {dimension_numbers = #tpu.dot_dimension_numbers<[1], [0], [0], [1], [0, 0, 1, 1], [], []>} : vector<16x4xf32>, vector<4x256xf32>, vector<16x256xf32> -> vector<16x256xf32>
    %c0_4 = arith.constant 0 : index
    %c0_5 = arith.constant 0 : index
    %4 = vector.load %arg3[%c0_4, %c0_5] : memref<16x1xf32, #tpu.memory_space<vmem>>, vector<16x1xf32>
    %5 = vector.broadcast %4 : vector<16x1xf32> to vector<16x256xf32>
    %6 = arith.addf %3, %5 : vector<16x256xf32>
    %cst_6 = arith.constant 0.000000e+00 : f32
    %cst_7 = arith.constant 6.000000e+00 : f32
    %7 = vector.broadcast %cst_6 : f32 to vector<16x256xf32>
    %8 = arith.maximumf %7, %6 : vector<16x256xf32>
    %9 = vector.broadcast %cst_7 : f32 to vector<16x256xf32>
    %10 = arith.minimumf %9, %8 : vector<16x256xf32>
    %cst_8 = arith.constant 0.000000e+00 : f32
    %11 = vector.broadcast %cst_8 : f32 to vector<16x256xf32>
    %c17_i32 = arith.constant 17 : i32
    %12 = tpu.dynamic_rotate %10 by %c17_i32 dim 1 : vector<16x256xf32>, i32 -> vector<16x256xf32>
    %c0_9 = arith.constant 0 : index
    %c0_10 = arith.constant 0 : index
    %c0_11 = arith.constant 0 : index
    %13 = vector.load %arg4[%c0_9, %c0_10, %c0_11] : memref<9x16x256xf32, #tpu.memory_space<vmem>>, vector<1x16x256xf32>
    %14 = vector.shape_cast %13 : vector<1x16x256xf32> to vector<16x256xf32>
    %15 = arith.mulf %12, %14 : vector<16x256xf32>
    %16 = arith.addf %11, %15 : vector<16x256xf32>
    %c16_i32 = arith.constant 16 : i32
    %17 = tpu.dynamic_rotate %10 by %c16_i32 dim 1 : vector<16x256xf32>, i32 -> vector<16x256xf32>
    %c1 = arith.constant 1 : index
    %c0_12 = arith.constant 0 : index
    %c0_13 = arith.constant 0 : index
    %18 = vector.load %arg4[%c1, %c0_12, %c0_13] : memref<9x16x256xf32, #tpu.memory_space<vmem>>, vector<1x16x256xf32>
    %19 = vector.shape_cast %18 : vector<1x16x256xf32> to vector<16x256xf32>
    %20 = arith.mulf %17, %19 : vector<16x256xf32>
    %21 = arith.addf %16, %20 : vector<16x256xf32>
    %c15_i32 = arith.constant 15 : i32
    %22 = tpu.dynamic_rotate %10 by %c15_i32 dim 1 : vector<16x256xf32>, i32 -> vector<16x256xf32>
    %c2 = arith.constant 2 : index
    %c0_14 = arith.constant 0 : index
    %c0_15 = arith.constant 0 : index
    %23 = vector.load %arg4[%c2, %c0_14, %c0_15] : memref<9x16x256xf32, #tpu.memory_space<vmem>>, vector<1x16x256xf32>
    %24 = vector.shape_cast %23 : vector<1x16x256xf32> to vector<16x256xf32>
    %25 = arith.mulf %22, %24 : vector<16x256xf32>
    %26 = arith.addf %21, %25 : vector<16x256xf32>
    %c1_i32 = arith.constant 1 : i32
    %27 = tpu.dynamic_rotate %10 by %c1_i32 dim 1 : vector<16x256xf32>, i32 -> vector<16x256xf32>
    %c3 = arith.constant 3 : index
    %c0_16 = arith.constant 0 : index
    %c0_17 = arith.constant 0 : index
    %28 = vector.load %arg4[%c3, %c0_16, %c0_17] : memref<9x16x256xf32, #tpu.memory_space<vmem>>, vector<1x16x256xf32>
    %29 = vector.shape_cast %28 : vector<1x16x256xf32> to vector<16x256xf32>
    %30 = arith.mulf %27, %29 : vector<16x256xf32>
    %31 = arith.addf %26, %30 : vector<16x256xf32>
    %c4 = arith.constant 4 : index
    %c0_18 = arith.constant 0 : index
    %c0_19 = arith.constant 0 : index
    %32 = vector.load %arg4[%c4, %c0_18, %c0_19] : memref<9x16x256xf32, #tpu.memory_space<vmem>>, vector<1x16x256xf32>
    %33 = vector.shape_cast %32 : vector<1x16x256xf32> to vector<16x256xf32>
    %34 = arith.mulf %10, %33 : vector<16x256xf32>
    %35 = arith.addf %31, %34 : vector<16x256xf32>
    %c255_i32 = arith.constant 255 : i32
    %36 = tpu.dynamic_rotate %10 by %c255_i32 dim 1 : vector<16x256xf32>, i32 -> vector<16x256xf32>
    %c5 = arith.constant 5 : index
    %c0_20 = arith.constant 0 : index
    %c0_21 = arith.constant 0 : index
    %37 = vector.load %arg4[%c5, %c0_20, %c0_21] : memref<9x16x256xf32, #tpu.memory_space<vmem>>, vector<1x16x256xf32>
    %38 = vector.shape_cast %37 : vector<1x16x256xf32> to vector<16x256xf32>
    %39 = arith.mulf %36, %38 : vector<16x256xf32>
    %40 = arith.addf %35, %39 : vector<16x256xf32>
    %c241_i32 = arith.constant 241 : i32
    %41 = tpu.dynamic_rotate %10 by %c241_i32 dim 1 : vector<16x256xf32>, i32 -> vector<16x256xf32>
    %c6 = arith.constant 6 : index
    %c0_22 = arith.constant 0 : index
    %c0_23 = arith.constant 0 : index
    %42 = vector.load %arg4[%c6, %c0_22, %c0_23] : memref<9x16x256xf32, #tpu.memory_space<vmem>>, vector<1x16x256xf32>
    %43 = vector.shape_cast %42 : vector<1x16x256xf32> to vector<16x256xf32>
    %44 = arith.mulf %41, %43 : vector<16x256xf32>
    %45 = arith.addf %40, %44 : vector<16x256xf32>
    %c240_i32 = arith.constant 240 : i32
    %46 = tpu.dynamic_rotate %10 by %c240_i32 dim 1 : vector<16x256xf32>, i32 -> vector<16x256xf32>
    %c7 = arith.constant 7 : index
    %c0_24 = arith.constant 0 : index
    %c0_25 = arith.constant 0 : index
    %47 = vector.load %arg4[%c7, %c0_24, %c0_25] : memref<9x16x256xf32, #tpu.memory_space<vmem>>, vector<1x16x256xf32>
    %48 = vector.shape_cast %47 : vector<1x16x256xf32> to vector<16x256xf32>
    %49 = arith.mulf %46, %48 : vector<16x256xf32>
    %50 = arith.addf %45, %49 : vector<16x256xf32>
    %c239_i32 = arith.constant 239 : i32
    %51 = tpu.dynamic_rotate %10 by %c239_i32 dim 1 : vector<16x256xf32>, i32 -> vector<16x256xf32>
    %c8 = arith.constant 8 : index
    %c0_26 = arith.constant 0 : index
    %c0_27 = arith.constant 0 : index
    %52 = vector.load %arg4[%c8, %c0_26, %c0_27] : memref<9x16x256xf32, #tpu.memory_space<vmem>>, vector<1x16x256xf32>
    %53 = vector.shape_cast %52 : vector<1x16x256xf32> to vector<16x256xf32>
    %54 = arith.mulf %51, %53 : vector<16x256xf32>
    %55 = arith.addf %50, %54 : vector<16x256xf32>
    %c0_28 = arith.constant 0 : index
    %c0_29 = arith.constant 0 : index
    %56 = vector.load %arg5[%c0_28, %c0_29] : memref<16x1xf32, #tpu.memory_space<vmem>>, vector<16x1xf32>
    %57 = vector.broadcast %56 : vector<16x1xf32> to vector<16x256xf32>
    %58 = arith.addf %55, %57 : vector<16x256xf32>
    %cst_30 = arith.constant 0.000000e+00 : f32
    %cst_31 = arith.constant 6.000000e+00 : f32
    %59 = vector.broadcast %cst_30 : f32 to vector<16x256xf32>
    %60 = arith.maximumf %59, %58 : vector<16x256xf32>
    %61 = vector.broadcast %cst_31 : f32 to vector<16x256xf32>
    %62 = arith.minimumf %61, %60 : vector<16x256xf32>
    %c0_32 = arith.constant 0 : index
    %c0_33 = arith.constant 0 : index
    %63 = vector.load %arg6[%c0_32, %c0_33] : memref<4x16xf32, #tpu.memory_space<vmem>>, vector<4x16xf32>
    %cst_34 = arith.constant dense<0.000000e+00> : vector<4x256xf32>
    %64 = tpu.matmul %63, %62, %cst_34 {dimension_numbers = #tpu.dot_dimension_numbers<[1], [0], [0], [1], [0, 0, 1, 1], [], []>} : vector<4x16xf32>, vector<16x256xf32>, vector<4x256xf32> -> vector<4x256xf32>
    %c0_35 = arith.constant 0 : index
    %c0_36 = arith.constant 0 : index
    %65 = vector.load %arg7[%c0_35, %c0_36] : memref<4x1xf32, #tpu.memory_space<vmem>>, vector<4x1xf32>
    %66 = vector.broadcast %65 : vector<4x1xf32> to vector<4x256xf32>
    %67 = arith.addf %64, %66 : vector<4x256xf32>
    %68 = arith.addf %67, %1 : vector<4x256xf32>
    %c0_37 = arith.constant 0 : index
    %c0_38 = arith.constant 0 : index
    %c0_39 = arith.constant 0 : index
    %69 = vector.load %arg8[%c0_37, %c0_38, %c0_39] : memref<1x4x256xf32, #tpu.memory_space<vmem>>, vector<1x4x256xf32>
    %70 = vector.shape_cast %69 : vector<1x4x256xf32> to vector<4x256xf32>
    %71 = vector.shape_cast %68 : vector<4x256xf32> to vector<1x4x256xf32>
    tpu.vector_store %arg8[%c0_37, %c0_38, %c0_39], %71 {strides = array<i32>} : memref<1x4x256xf32, #tpu.memory_space<vmem>>, vector<1x4x256xf32>,
    return
  }
  func.func @transform_0(%arg0: i32) -> (i32, i32, i32) {
    %c0_i32 = arith.constant 0 : i32
    %c0_i32_0 = arith.constant 0 : i32
    %c0_i32_1 = arith.constant 0 : i32
    return %arg0, %c0_i32, %c0_i32_0 : i32, i32, i32
  }
  func.func @transform_1(%arg0: i32) -> (i32, i32) {
    %c0_i32 = arith.constant 0 : i32
    %c0_i32_0 = arith.constant 0 : i32
    %c0_i32_1 = arith.constant 0 : i32
    return %c0_i32, %c0_i32_0 : i32, i32
  }
  func.func @transform_2(%arg0: i32) -> (i32, i32) {
    %c0_i32 = arith.constant 0 : i32
    %c0_i32_0 = arith.constant 0 : i32
    %c0_i32_1 = arith.constant 0 : i32
    return %c0_i32, %c0_i32_0 : i32, i32
  }
  func.func @transform_3(%arg0: i32) -> (i32, i32, i32) {
    %c0_i32 = arith.constant 0 : i32
    %c0_i32_0 = arith.constant 0 : i32
    %c0_i32_1 = arith.constant 0 : i32
    %c0_i32_2 = arith.constant 0 : i32
    return %c0_i32, %c0_i32_0, %c0_i32_1 : i32, i32, i32
  }
  func.func @transform_4(%arg0: i32) -> (i32, i32) {
    %c0_i32 = arith.constant 0 : i32
    %c0_i32_0 = arith.constant 0 : i32
    %c0_i32_1 = arith.constant 0 : i32
    return %c0_i32, %c0_i32_0 : i32, i32
  }
  func.func @transform_5(%arg0: i32) -> (i32, i32) {
    %c0_i32 = arith.constant 0 : i32
    %c0_i32_0 = arith.constant 0 : i32
    %c0_i32_1 = arith.constant 0 : i32
    return %c0_i32, %c0_i32_0 : i32, i32
  }
  func.func @transform_6(%arg0: i32) -> (i32, i32) {
    %c0_i32 = arith.constant 0 : i32
    %c0_i32_0 = arith.constant 0 : i32
    %c0_i32_1 = arith.constant 0 : i32
    return %c0_i32, %c0_i32_0 : i32, i32
  }
  func.func @transform_7(%arg0: i32) -> (i32, i32, i32) {
    %c0_i32 = arith.constant 0 : i32
    %c0_i32_0 = arith.constant 0 : i32
    %c0_i32_1 = arith.constant 0 : i32
    return %arg0, %c0_i32, %c0_i32_0 : i32, i32, i32
  }
}

</mosaic_0001>

<llo_original>
// kernel: inverted_residual.1
$region0: #{inverted_residual.1}
  #allocation0 [shape = 'u32[]', space=smem, size = 0x4, offset = 0x4, fixed_abs, tag = 'smem constant byte address 0x4 - core index']
  #allocation1 [shape = 'u32[144,128]{1,0:T(1,128)}', space=vmem, size = 0x12000, scoped, tag = 'internal scratch']
  %s0 = inlined_call_operand.vmem [shape: f32[2,4,256], index: 0, kind: input, shape index: {}]
  %s1 = inlined_call_operand.vmem [shape: f32[16,4], index: 1, kind: input, shape index: {}]
  %s2 = inlined_call_operand.vmem [shape: f32[16,1], index: 2, kind: input, shape index: {}]
  %s3 = inlined_call_operand.vmem [shape: f32[9,16,256], index: 3, kind: input, shape index: {}]
  %s4 = inlined_call_operand.vmem [shape: f32[16,1], index: 4, kind: input, shape index: {}]
  %s5 = inlined_call_operand.vmem [shape: f32[4,16], index: 5, kind: input, shape index: {}]
  %s6 = inlined_call_operand.vmem [shape: f32[4,1], index: 6, kind: input, shape index: {}]
  %s7 = inlined_call_operand.vmem [shape: f32[2,4,256], index: 7, kind: output, shape index: {}]
  %s8 = sld [smem:[#allocation0]]
  $region61: #{inverted_residual.1} parent=0
    _
  %s10 = ssub.s32 1, %s8
  %s11 = scalar_select 0, %s10, %s8
  loop: start=0, step=1, limit=4
  $region2: #{inverted_residual.1} parent=0 // loop_pre_header
    _
  $region3: #{inverted_residual.1} parent=0 // loop_header
    %s13 = sphi 0, %s17
    %p14 = scmp.ge.s32.totalorder %s13, 4
    %s23 = sphi 0, %s25
    %s26 = sphi 0, %s23
    %s27 = sphi 0, %s26
    %s43 = sphi 0, %s27
    %s47 = sphi 0, %s47
    %s49 = sphi 0, %s47
    %s50 = sphi 0, %s49
    %s64 = sphi 0, %s50
    %s68 = sphi 0, %s68
    %s70 = sphi 0, %s68
    %s71 = sphi 0, %s70
    %s85 = sphi 0, %s71
    %s89 = sphi 0, %s89
    %s91 = sphi 0, %s89
    %s92 = sphi 0, %s91
    %s106 = sphi 0, %s92
    %s110 = sphi 0, %s110
    %s112 = sphi 0, %s110
    %s113 = sphi 0, %s112
    %s127 = sphi 0, %s113
    %s131 = sphi 0, %s131
    %s133 = sphi 0, %s131
    %s134 = sphi 0, %s133
    %s148 = sphi 0, %s134
    %s152 = sphi 0, %s152
    %s154 = sphi 0, %s152
    %s155 = sphi 0, %s154
    %s169 = sphi 0, %s155
    %s175 = sphi 0, %s177
    %s178 = sphi 0, %s175
    %s179 = sphi 0, %s178
    %s195 = sphi 0, %s179
  $region4: #{inverted_residual.1} parent=0 // loop_header_branch
    %16 = sbr.rel (%p14) target = $region8
  $region5: #{inverted_residual.1} parent=0 // loop_body
    %s18 = ssub.s32 %s13, 1
    %s19 = ssub.s32 %s13, 2
    %s20 = sadd.s32 %s13, 1
    %s21 = ssub.s32 %s13, %s20
    %p22 = scmp.eq.s32.totalorder %s21, 0
    %s24 = sadd.s32 %s23, 1
    %s25 = scalar_select %p22, %s23, %s24
    %p28 = pneg %p22
    %p29 = scmp.eq.s32.totalorder %s13, 1
    %p30 = por %p28, %p29
    %p31 = scmp.ne.s32.totalorder %s23, %s26
    %p32 = scmp.eq.s32.totalorder %s13, 0
    %p33 = por %p31, %p32
    %p34 = scmp.ne.s32.totalorder %s23, %s26
    %p35 = scmp.eq.s32.totalorder %s18, 1
    %p36 = por %p34, %p35
    %p37 = scmp.ne.s32.totalorder %s26, %s27
    %p38 = scmp.eq.s32.totalorder %s18, 0
    %p39 = por %p37, %p38
    %p40 = scmp.ne.s32.totalorder %s26, %s27
    %p41 = scmp.eq.s32.totalorder %s19, 1
    %p42 = por %p40, %p41
    %p44 = scmp.ne.s32.totalorder %s27, %s43
    %p45 = scmp.eq.s32.totalorder %s19, 0
    %p46 = por %p44, %p45
    %s48 = sadd.s32 %s47, 1
    %p51 = scmp.eq.s32.totalorder %s13, 1
    %p52 = scmp.ne.s32.totalorder %s47, %s49
    %p53 = scmp.eq.s32.totalorder %s13, 0
    %p54 = por %p52, %p53
    %p55 = scmp.ne.s32.totalorder %s47, %s49
    %p56 = scmp.eq.s32.totalorder %s18, 1
    %p57 = por %p55, %p56
    %p58 = scmp.ne.s32.totalorder %s49, %s50
    %p59 = scmp.eq.s32.totalorder %s18, 0
    %p60 = por %p58, %p59
    %p61 = scmp.ne.s32.totalorder %s49, %s50
    %p62 = scmp.eq.s32.totalorder %s19, 1
    %p63 = por %p61, %p62
    %p65 = scmp.ne.s32.totalorder %s50, %s64
    %p66 = scmp.eq.s32.totalorder %s19, 0
    %p67 = por %p65, %p66
    %s69 = sadd.s32 %s68, 1
    %p72 = scmp.eq.s32.totalorder %s13, 1
    %p73 = scmp.ne.s32.totalorder %s68, %s70
    %p74 = scmp.eq.s32.totalorder %s13, 0
    %p75 = por %p73, %p74
    %p76 = scmp.ne.s32.totalorder %s68, %s70
    %p77 = scmp.eq.s32.totalorder %s18, 1
    %p78 = por %p76, %p77
    %p79 = scmp.ne.s32.totalorder %s70, %s71
    %p80 = scmp.eq.s32.totalorder %s18, 0
    %p81 = por %p79, %p80
    %p82 = scmp.ne.s32.totalorder %s70, %s71
    %p83 = scmp.eq.s32.totalorder %s19, 1
    %p84 = por %p82, %p83
    %p86 = scmp.ne.s32.totalorder %s71, %s85
    %p87 = scmp.eq.s32.totalorder %s19, 0
    %p88 = por %p86, %p87
    %s90 = sadd.s32 %s89, 1
    %p93 = scmp.eq.s32.totalorder %s13, 1
    %p94 = scmp.ne.s32.totalorder %s89, %s91
    %p95 = scmp.eq.s32.totalorder %s13, 0
    %p96 = por %p94, %p95
    %p97 = scmp.ne.s32.totalorder %s89, %s91
    %p98 = scmp.eq.s32.totalorder %s18, 1
    %p99 = por %p97, %p98
    %p100 = scmp.ne.s32.totalorder %s91, %s92
    %p101 = scmp.eq.s32.totalorder %s18, 0
    %p102 = por %p100, %p101
    %p103 = scmp.ne.s32.totalorder %s91, %s92
    %p104 = scmp.eq.s32.totalorder %s19, 1
    %p105 = por %p103, %p104
    %p107 = scmp.ne.s32.totalorder %s92, %s106
    %p108 = scmp.eq.s32.totalorder %s19, 0
    %p109 = por %p107, %p108
    %s111 = sadd.s32 %s110, 1
    %p114 = scmp.eq.s32.totalorder %s13, 1
    %p115 = scmp.ne.s32.totalorder %s110, %s112
    %p116 = scmp.eq.s32.totalorder %s13, 0
    %p117 = por %p115, %p116
    %p118 = scmp.ne.s32.totalorder %s110, %s112
    %p119 = scmp.eq.s32.totalorder %s18, 1
    %p120 = por %p118, %p119
    %p121 = scmp.ne.s32.totalorder %s112, %s113
    %p122 = scmp.eq.s32.totalorder %s18, 0
    %p123 = por %p121, %p122
    %p124 = scmp.ne.s32.totalorder %s112, %s113
    %p125 = scmp.eq.s32.totalorder %s19, 1
    %p126 = por %p124, %p125
    %p128 = scmp.ne.s32.totalorder %s113, %s127
    %p129 = scmp.eq.s32.totalorder %s19, 0
    %p130 = por %p128, %p129
    %s132 = sadd.s32 %s131, 1
    %p135 = scmp.eq.s32.totalorder %s13, 1
    %p136 = scmp.ne.s32.totalorder %s131, %s133
    %p137 = scmp.eq.s32.totalorder %s13, 0
    %p138 = por %p136, %p137
    %p139 = scmp.ne.s32.totalorder %s131, %s133
    %p140 = scmp.eq.s32.totalorder %s18, 1
    %p141 = por %p139, %p140
    %p142 = scmp.ne.s32.totalorder %s133, %s134
    %p143 = scmp.eq.s32.totalorder %s18, 0
    %p144 = por %p142, %p143
    %p145 = scmp.ne.s32.totalorder %s133, %s134
    %p146 = scmp.eq.s32.totalorder %s19, 1
    %p147 = por %p145, %p146
    %p149 = scmp.ne.s32.totalorder %s134, %s148
    %p150 = scmp.eq.s32.totalorder %s19, 0
    %p151 = por %p149, %p150
    %s153 = sadd.s32 %s152, 1
    %p156 = scmp.eq.s32.totalorder %s13, 1
    %p157 = scmp.ne.s32.totalorder %s152, %s154
    %p158 = scmp.eq.s32.totalorder %s13, 0
    %p159 = por %p157, %p158
    %p160 = scmp.ne.s32.totalorder %s152, %s154
    %p161 = scmp.eq.s32.totalorder %s18, 1
    %p162 = por %p160, %p161
    %p163 = scmp.ne.s32.totalorder %s154, %s155
    %p164 = scmp.eq.s32.totalorder %s18, 0
    %p165 = por %p163, %p164
    %p166 = scmp.ne.s32.totalorder %s154, %s155
    %p167 = scmp.eq.s32.totalorder %s19, 1
    %p168 = por %p166, %p167
    %p170 = scmp.ne.s32.totalorder %s155, %s169
    %p171 = scmp.eq.s32.totalorder %s19, 0
    %p172 = por %p170, %p171
    %s173 = ssub.s32 %s13, %s20
    %p174 = scmp.eq.s32.totalorder %s173, 0
    %s176 = sadd.s32 %s175, 1
    %s177 = scalar_select %p174, %s175, %s176
    %p180 = pneg %p174
    %p181 = scmp.eq.s32.totalorder %s13, 1
    %p182 = por %p180, %p181
    %p183 = scmp.ne.s32.totalorder %s175, %s178
    %p184 = scmp.eq.s32.totalorder %s13, 0
    %p185 = por %p183, %p184
    %p186 = scmp.ne.s32.totalorder %s175, %s178
    %p187 = scmp.eq.s32.totalorder %s18, 1
    %p188 = por %p186, %p187
    %p189 = scmp.ne.s32.totalorder %s178, %s179
    %p190 = scmp.eq.s32.totalorder %s18, 0
    %p191 = por %p189, %p190
    %p192 = scmp.ne.s32.totalorder %s178, %s179
    %p193 = scmp.eq.s32.totalorder %s19, 1
    %p194 = por %p192, %p193
    %p196 = scmp.ne.s32.totalorder %s179, %s195
    %p197 = scmp.eq.s32.totalorder %s19, 0
    %p198 = por %p196, %p197
    %p199 = scmp.le.s32.totalorder 1, %s13
    %p200 = scmp.lt.s32.totalorder %s13, 3
    %p201 = pnand %p199, %p200
    %p202 = pneg %p201
    // Predicated region
    $region9: #{inverted_residual.1} parent=5 // pred_check
      _
    $region10: #{inverted_residual.1} parent=5 // pred_check_branch
      %204 = sbr.rel (%p201) target = $region12
    $region11: #{inverted_residual.1} parent=5 // pred_region
      %s205 = ssub.s32 %s13, 1
      // Predicated region
      $region13: #{inverted_residual.1} parent=11 // pred_check
        %p206 = pneg %p60
      $region14: #{inverted_residual.1} parent=11 // pred_check_branch
        %208 = sbr.rel (%p206) target = $region16
      $region15: #{inverted_residual.1} parent=11 // pred_region
        _
      $region16: #{inverted_residual.1} parent=11 // pred_fallthru
        _
      // Predicated region
      $region17: #{inverted_residual.1} parent=11 // pred_check
        %p209 = pneg %p81
      $region18: #{inverted_residual.1} parent=11 // pred_check_branch
        %211 = sbr.rel (%p209) target = $region20
      $region19: #{inverted_residual.1} parent=11 // pred_region
        _
      $region20: #{inverted_residual.1} parent=11 // pred_fallthru
        _
      // Predicated region
      $region21: #{inverted_residual.1} parent=11 // pred_check
        %p212 = pneg %p102
      $region22: #{inverted_residual.1} parent=11 // pred_check_branch
        %214 = sbr.rel (%p212) target = $region24
      $region23: #{inverted_residual.1} parent=11 // pred_region
        _
      $region24: #{inverted_residual.1} parent=11 // pred_fallthru
        _
      // Predicated region
      $region25: #{inverted_residual.1} parent=11 // pred_check
        %p215 = pneg %p123
      $region26: #{inverted_residual.1} parent=11 // pred_check_branch
        %217 = sbr.rel (%p215) target = $region28
      $region27: #{inverted_residual.1} parent=11 // pred_region
        _
      $region28: #{inverted_residual.1} parent=11 // pred_fallthru
        _
      // Predicated region
      $region29: #{inverted_residual.1} parent=11 // pred_check
        %p218 = pneg %p144
      $region30: #{inverted_residual.1} parent=11 // pred_check_branch
        %220 = sbr.rel (%p218) target = $region32
      $region31: #{inverted_residual.1} parent=11 // pred_region
        _
      $region32: #{inverted_residual.1} parent=11 // pred_fallthru
        _
      // Predicated region
      $region33: #{inverted_residual.1} parent=11 // pred_check
        %p221 = pneg %p165
      $region34: #{inverted_residual.1} parent=11 // pred_check_branch
        %223 = sbr.rel (%p221) target = $region36
      $region35: #{inverted_residual.1} parent=11 // pred_region
        _
      $region36: #{inverted_residual.1} parent=11 // pred_fallthru
        _
    $region12: #{inverted_residual.1} parent=5 // pred_fallthru
      _
    %p224 = scmp.lt.s32.totalorder %s13, 2
    // Predicated region
    $region37: #{inverted_residual.1} parent=5 // pred_check
      %p225 = pneg %p224
    $region38: #{inverted_residual.1} parent=5 // pred_check_branch
      %227 = sbr.rel (%p225) target = $region40
    $region39: #{inverted_residual.1} parent=5 // pred_region
      // Predicated region
      $region41: #{inverted_residual.1} parent=39 // pred_check
        %p228 = pneg %p33
      $region42: #{inverted_residual.1} parent=39 // pred_check_branch
        %230 = sbr.rel (%p228) target = $region44
      $region43: #{inverted_residual.1} parent=39 // pred_region
        %p231 = scmp.lt.s32.totalorder %s13, 1
        %s232 = scalar_select %p231, %s13, 1
        %s233 = smul.addr %s232, 2
        %s234 = smul.addr %s233, 4
        %s235 = scalar_lea.vmem %s0, %s234
      $region44: #{inverted_residual.1} parent=39 // pred_fallthru
        _
    $region40: #{inverted_residual.1} parent=5 // pred_fallthru
      _
    %p236 = scmp.le.s32.totalorder 1, %s13
    %p237 = scmp.lt.s32.totalorder %s13, 3
    %p238 = pnand %p236, %p237
    %p239 = pneg %p238
    // Predicated region
    $region45: #{inverted_residual.1} parent=5 // pred_check
      _
    $region46: #{inverted_residual.1} parent=5 // pred_check_branch
      %241 = sbr.rel (%p238) target = $region48
    $region47: #{inverted_residual.1} parent=5 // pred_region
      %s242 = ssub.s32 %s13, 1
      %p243 = scmp.lt.s32.totalorder %s18, 1
      %s244 = scalar_select %p243, %s18, 1
      %s245 = smul.addr %s244, 2
      %s246 = smul.addr %s245, 4
      %s247 = scalar_lea.vmem %s0, %s246
      %p248 = pneg %p39
      %p249 = pneg %p36
      %p250 = pneg %p60
      %p251 = pneg %p57
      %p252 = pneg %p81
      %p253 = pneg %p78
      %p254 = pneg %p102
      %p255 = pneg %p99
      %p256 = pneg %p123
      %p257 = pneg %p120
      %p258 = pneg %p144
      %p259 = pneg %p141
      %p260 = pneg %p165
      %p261 = pneg %p162
      %p262 = pneg %p191
      %p263 = pneg %p188
      %p264 = scmp.lt.s32.totalorder %s18, 1
      %s265 = scalar_select %p264, %s18, 1
      %s266 = smul.addr %s265, 2
      %s267 = smul.addr %s266, 4
      %s268 = scalar_lea.vmem %s7, %s267
      %p269 = scmp.lt.s32.totalorder %s18, 1
      %s270 = scalar_select %p269, %s18, 1
      %s271 = smul.addr %s270, 2
      %s272 = smul.addr %s271, 4
      %s273 = scalar_lea.vmem %s0, %s272
      %p274 = scmp.lt.s32.totalorder %s18, 1
      %s275 = scalar_select %p274, %s18, 1
      %s276 = smul.addr %s275, 2
      %s277 = smul.addr %s276, 4
      %s278 = scalar_lea.vmem %s7, %s277
      %v279 = vld [vmem:[%s273] sm:$0xff]
      %v280 = vld [vmem:[%s1] sm:$0xff]
      %v281 = vld [vmem:[%s1 + $0x8] sm:$0xff]
      %v282 = vld [vmem:[%s2] sm:$0xff]
      %v283 = vld [vmem:[%s2 + $0x8] sm:$0xff]
      %285 = vset.pattern.permute.xlu0 0
      %286 = vperm.xlu0 %285, %v282
      %v287 = vpop.permute.xlu0 %286
      %290 = vset.pattern.permute.xlu0 0
      %291 = vperm.xlu0 %290, %v283
      %v292 = vpop.permute.xlu0 %291
      %v295 = vcombine.high %v279, %v279
      %vm296 = vcmask 31744
      %v298 = vsel %vm296, %v280, 0
      %v301 = vsel %vm296, %v281, 0
      %vm303 = vcmask 1043456
      %v304 = vsel %vm303, %v279, 0
      %v306 = vsel %vm303, %v295, 0
      %308 = vmatprep.subr.mxu0 %v306
      %309 = vmatpush1.msra.mxu0 %v304
      %310 = vmatprep.subr.mxu0 0.0
      %311 = vmatpush1.msra.mxu0 0.0
      %312 = vmatprep.subr.mxu0 0.0
      %313 = vmatpush1.msra.mxu0 0.0
      %314 = vmatprep.subr.mxu0 0.0
      %315 = vmatpush1.msra.mxu0 0.0
      %316 = vmatprep.subr.mxu0 0.0
      %317 = vmatpush1.msra.mxu0 0.0
      %318 = vmatprep.subr.mxu0 0.0
      %319 = vmatpush1.msra.mxu0 0.0
      %320 = vmatprep.subr.mxu0 0.0
      %321 = vmatpush1.msra.mxu0 0.0
      %322 = vmatprep.subr.mxu0 0.0
      %323 = vmatpush1.msra.mxu0 0.0
      %324 = vmatprep.subr.mxu0 0.0
      %325 = vmatpush1.msra.mxu0 0.0
      %326 = vmatprep.subr.mxu0 0.0
      %327 = vmatpush1.msra.mxu0 0.0
      %328 = vmatprep.subr.mxu0 0.0
      %329 = vmatpush1.msra.mxu0 0.0
      %330 = vmatprep.subr.mxu0 0.0
      %331 = vmatpush1.msra.mxu0 0.0
      %332 = vmatprep.subr.mxu0 0.0
      %333 = vmatpush1.msra.mxu0 0.0
      %334 = vmatprep.subr.mxu0 0.0
      %335 = vmatpush1.msra.mxu0 0.0
      %336 = vmatprep.subr.mxu0 0.0
      %337 = vmatpush1.msra.mxu0 0.0
      %338 = vmatprep.subr.mxu0 0.0
      %339 = vmatpush1.msra.mxu0 0.0
      %340 = vmatprep.subr.mxu0 0.0
      %341 = vmatpush1.msra.mxu0 0.0
      %342 = vmatprep.subr.mxu0 0.0
      %343 = vmatpush1.msra.mxu0 0.0
      %344 = vmatprep.subr.mxu0 0.0
      %345 = vmatpush1.msra.mxu0 0.0
      %346 = vmatprep.subr.mxu0 0.0
      %347 = vmatpush1.msra.mxu0 0.0
      %348 = vmatprep.subr.mxu0 0.0
      %349 = vmatpush1.msra.mxu0 0.0
      %350 = vmatprep.subr.mxu0 0.0
      %351 = vmatpush1.msra.mxu0 0.0
      %352 = vmatprep.subr.mxu0 0.0
      %353 = vmatpush1.msra.mxu0 0.0
      %354 = vmatprep.subr.mxu0 0.0
      %355 = vmatpush1.msra.mxu0 0.0
      %356 = vmatprep.subr.mxu0 0.0
      %357 = vmatpush1.msra.mxu0 0.0
      %358 = vmatprep.subr.mxu0 0.0
      %359 = vmatpush1.msra.mxu0 0.0
      %360 = vmatprep.subr.mxu0 0.0
      %361 = vmatpush1.msra.mxu0 0.0
      %362 = vmatprep.subr.mxu0 0.0
      %363 = vmatpush1.msra.mxu0 0.0
      %364 = vmatprep.subr.mxu0 0.0
      %365 = vmatpush1.msra.mxu0 0.0
      %366 = vmatprep.subr.mxu0 0.0
      %367 = vmatpush1.msra.mxu0 0.0
      %368 = vmatprep.subr.mxu0 0.0
      %369 = vmatpush1.msra.mxu0 0.0
      %370 = vmatprep.subr.mxu0 0.0
      %371 = vmatpush1.msra.mxu0 0.0
      %372 = vmatprep.mubr.f32.mxu0 0.0
      %373 = vmatmul.mubr.f32.gmra.mrb[0].mxu0 %v298
      %v374 = vpop.f32.mrb[0].mxu0
      %v375 = vadd.f32 %v287, %v374
      %v376 = vpop.f32.mrb[0].mxu0
      %v377 = vadd.f32 %v287, %v376
      %378 = vmatprep.mubr.f32.mxu0 0.0
      %379 = vmatmul.mubr.f32.gmra.mrb[0].mxu0 %v301
      %v380 = vpop.f32.mrb[0].mxu0
      %v381 = vadd.f32 %v292, %v380
      %v382 = vpop.f32.mrb[0].mxu0
      %v383 = vadd.f32 %v292, %v382
      %384 = vdwg.mxu0
      %v385 = vmax.f32 %v375, 0.0
      %v386 = vmax.f32 %v377, 0.0
      %v387 = vmax.f32 %v381, 0.0
      %v388 = vmax.f32 %v383, 0.0
      %v389 = vmin.f32 %v385, 6.0
      %v390 = vmin.f32 %v386, 6.0
      %v391 = vmin.f32 %v387, 6.0
      %v392 = vmin.f32 %v388, 6.0
      %393 = vrot.lane.b32.xlu0 %v389, 17
      %v394 = vpop.permute.xlu0 %393
      %395 = vrot.lane.b32.xlu0 %v391, 17
      %v396 = vpop.permute.xlu0 %395
      %397 = vrot.lane.b32.xlu0 %v390, 17
      %v398 = vpop.permute.xlu0 %397
      %399 = vrot.lane.b32.xlu0 %v392, 17
      %v400 = vpop.permute.xlu0 %399
      %v401 = vlaneseq
      %v402 = vand.u32 %v401, 127
      %vm403 = vcmp.lt.s32.totalorder %v402, 17
      %v404 = vsel %vm403, %v394, %v398
      %v405 = vsel %vm403, %v396, %v400
      %v406 = vsel %vm403, %v398, %v394
      %v407 = vsel %vm403, %v400, %v396
      %v408 = vld [vmem:[%s3] sm:$0xff]
      %v409 = vld [vmem:[%s3 + $0x8] sm:$0xff]
      %v410 = vld [vmem:[%s3 + $0x10] sm:$0xff]
      %v411 = vld [vmem:[%s3 + $0x18] sm:$0xff]
      %v412 = vmul.f32 %v406, %v408
      %v413 = vmul.f32 %v404, %v409
      %v414 = vmul.f32 %v407, %v410
      %v415 = vmul.f32 %v405, %v411
      %v416 = vadd.f32 %v412, 0.0
      %v417 = vadd.f32 %v413, 0.0
      %v418 = vadd.f32 %v414, 0.0
      %v419 = vadd.f32 %v415, 0.0
      %420 = vrot.lane.b32.xlu0 %v389, 16
      %v421 = vpop.permute.xlu0 %420
      %422 = vrot.lane.b32.xlu0 %v391, 16
      %v423 = vpop.permute.xlu0 %422
      %424 = vrot.lane.b32.xlu0 %v390, 16
      %v425 = vpop.permute.xlu0 %424
      %426 = vrot.lane.b32.xlu0 %v392, 16
      %v427 = vpop.permute.xlu0 %426
      %vm428 = vcmp.lt.s32.totalorder %v402, 16
      %v429 = vsel %vm428, %v421, %v425
      %v430 = vsel %vm428, %v423, %v427
      %v431 = vsel %vm428, %v425, %v421
      %v432 = vsel %vm428, %v427, %v423
      %s433 = scalar_lea.vmem %s3, 32
      %v434 = vld [vmem:[%s433] sm:$0xff]
      %v435 = vld [vmem:[%s433 + $0x8] sm:$0xff]
      %v436 = vld [vmem:[%s433 + $0x10] sm:$0xff]
      %v437 = vld [vmem:[%s433 + $0x18] sm:$0xff]
      %v438 = vmul.f32 %v431, %v434
      %v439 = vmul.f32 %v429, %v435
      %v440 = vmul.f32 %v432, %v436
      %v441 = vmul.f32 %v430, %v437
      %v442 = vadd.f32 %v416, %v438
      %v443 = vadd.f32 %v417, %v439
      %v444 = vadd.f32 %v418, %v440
      %v445 = vadd.f32 %v419, %v441
      %446 = vrot.lane.b32.xlu0 %v389, 15
      %v447 = vpop.permute.xlu0 %446
      %448 = vrot.lane.b32.xlu0 %v391, 15
      %v449 = vpop.permute.xlu0 %448
      %450 = vrot.lane.b32.xlu0 %v390, 15
      %v451 = vpop.permute.xlu0 %450
      %452 = vrot.lane.b32.xlu0 %v392, 15
      %v453 = vpop.permute.xlu0 %452
      %vm454 = vcmp.lt.s32.totalorder %v402, 15
      %v455 = vsel %vm454, %v447, %v451
      %v456 = vsel %vm454, %v449, %v453
      %v457 = vsel %vm454, %v451, %v447
      %v458 = vsel %vm454, %v453, %v449
      %s459 = scalar_lea.vmem %s3, 64
      %v460 = vld [vmem:[%s459] sm:$0xff]
      %v461 = vld [vmem:[%s459 + $0x8] sm:$0xff]
      %v462 = vld [vmem:[%s459 + $0x10] sm:$0xff]
      %v463 = vld [vmem:[%s459 + $0x18] sm:$0xff]
      %v464 = vmul.f32 %v457, %v460
      %v465 = vmul.f32 %v455, %v461
      %v466 = vmul.f32 %v458, %v462
      %v467 = vmul.f32 %v456, %v463
      %v468 = vadd.f32 %v442, %v464
      %v469 = vadd.f32 %v443, %v465
      %v470 = vadd.f32 %v444, %v466
      %v471 = vadd.f32 %v445, %v467
      %472 = vrot.lane.b32.xlu0 %v389, 1
      %v473 = vpop.permute.xlu0 %472
      %474 = vrot.lane.b32.xlu0 %v391, 1
      %v475 = vpop.permute.xlu0 %474
      %476 = vrot.lane.b32.xlu0 %v390, 1
      %v477 = vpop.permute.xlu0 %476
      %478 = vrot.lane.b32.xlu0 %v392, 1
      %v479 = vpop.permute.xlu0 %478
      %vm480 = vcmp.lt.s32.totalorder %v402, 1
      %v481 = vsel %vm480, %v473, %v477
      %v482 = vsel %vm480, %v475, %v479
      %v483 = vsel %vm480, %v477, %v473
      %v484 = vsel %vm480, %v479, %v475
      %s485 = scalar_lea.vmem %s3, 96
      %v486 = vld [vmem:[%s485] sm:$0xff]
      %v487 = vld [vmem:[%s485 + $0x8] sm:$0xff]
      %v488 = vld [vmem:[%s485 + $0x10] sm:$0xff]
      %v489 = vld [vmem:[%s485 + $0x18] sm:$0xff]
      %v490 = vmul.f32 %v483, %v486
      %v491 = vmul.f32 %v481, %v487
      %v492 = vmul.f32 %v484, %v488
      %v493 = vmul.f32 %v482, %v489
      %v494 = vadd.f32 %v468, %v490
      %v495 = vadd.f32 %v469, %v491
      %v496 = vadd.f32 %v470, %v492
      %v497 = vadd.f32 %v471, %v493
      %s498 = scalar_lea.vmem %s3, 128
      %v499 = vld [vmem:[%s498] sm:$0xff]
      %v500 = vld [vmem:[%s498 + $0x8] sm:$0xff]
      %v501 = vld [vmem:[%s498 + $0x10] sm:$0xff]
      %v502 = vld [vmem:[%s498 + $0x18] sm:$0xff]
      %v503 = vmul.f32 %v389, %v499
      %v504 = vmul.f32 %v390, %v500
      %v505 = vmul.f32 %v391, %v501
      %v506 = vmul.f32 %v392, %v502
      %v507 = vadd.f32 %v494, %v503
      %v508 = vadd.f32 %v495, %v504
      %v509 = vadd.f32 %v496, %v505
      %v510 = vadd.f32 %v497, %v506
      %511 = vrot.lane.b32.xlu0 %v389, 127
      %v512 = vpop.permute.xlu0 %511
      %513 = vrot.lane.b32.xlu0 %v391, 127
      %v514 = vpop.permute.xlu0 %513
      %515 = vrot.lane.b32.xlu0 %v390, 127
      %v516 = vpop.permute.xlu0 %515
      %517 = vrot.lane.b32.xlu0 %v392, 127
      %v518 = vpop.permute.xlu0 %517
      %vm519 = vcmp.lt.s32.totalorder %v402, 127
      %v520 = vsel %vm519, %v512, %v516
      %v521 = vsel %vm519, %v514, %v518
      %v522 = vsel %vm519, %v516, %v512
      %v523 = vsel %vm519, %v518, %v514
      %s524 = scalar_lea.vmem %s3, 160
      %v525 = vld [vmem:[%s524] sm:$0xff]
      %v526 = vld [vmem:[%s524 + $0x8] sm:$0xff]
      %v527 = vld [vmem:[%s524 + $0x10] sm:$0xff]
      %v528 = vld [vmem:[%s524 + $0x18] sm:$0xff]
      %v529 = vmul.f32 %v520, %v525
      %v530 = vmul.f32 %v522, %v526
      %v531 = vmul.f32 %v521, %v527
      %v532 = vmul.f32 %v523, %v528
      %v533 = vadd.f32 %v507, %v529
      %v534 = vadd.f32 %v508, %v530
      %v535 = vadd.f32 %v509, %v531
      %v536 = vadd.f32 %v510, %v532
      %537 = vrot.lane.b32.xlu0 %v389, 113
      %v538 = vpop.permute.xlu0 %537
      %539 = vrot.lane.b32.xlu0 %v391, 113
      %v540 = vpop.permute.xlu0 %539
      %541 = vrot.lane.b32.xlu0 %v390, 113
      %v542 = vpop.permute.xlu0 %541
      %543 = vrot.lane.b32.xlu0 %v392, 113
      %v544 = vpop.permute.xlu0 %543
      %vm545 = vcmp.lt.s32.totalorder %v402, 113
      %v546 = vsel %vm545, %v538, %v542
      %v547 = vsel %vm545, %v540, %v544
      %v548 = vsel %vm545, %v542, %v538
      %v549 = vsel %vm545, %v544, %v540
      %s550 = scalar_lea.vmem %s3, 192
      %v551 = vld [vmem:[%s550] sm:$0xff]
      %v552 = vld [vmem:[%s550 + $0x8] sm:$0xff]
      %v553 = vld [vmem:[%s550 + $0x10] sm:$0xff]
      %v554 = vld [vmem:[%s550 + $0x18] sm:$0xff]
      %v555 = vmul.f32 %v546, %v551
      %v556 = vmul.f32 %v548, %v552
      %v557 = vmul.f32 %v547, %v553
      %v558 = vmul.f32 %v549, %v554
      %v559 = vadd.f32 %v533, %v555
      %v560 = vadd.f32 %v534, %v556
      %v561 = vadd.f32 %v535, %v557
      %v562 = vadd.f32 %v536, %v558
      %563 = vrot.lane.b32.xlu0 %v389, 112
      %v564 = vpop.permute.xlu0 %563
      %565 = vrot.lane.b32.xlu0 %v391, 112
      %v566 = vpop.permute.xlu0 %565
      %567 = vrot.lane.b32.xlu0 %v390, 112
      %v568 = vpop.permute.xlu0 %567
      %569 = vrot.lane.b32.xlu0 %v392, 112
      %v570 = vpop.permute.xlu0 %569
      %vm571 = vcmp.lt.s32.totalorder %v402, 112
      %v572 = vsel %vm571, %v564, %v568
      %v573 = vsel %vm571, %v566, %v570
      %v574 = vsel %vm571, %v568, %v564
      %v575 = vsel %vm571, %v570, %v566
      %s576 = scalar_lea.vmem %s3, 224
      %v577 = vld [vmem:[%s576] sm:$0xff]
      %v578 = vld [vmem:[%s576 + $0x8] sm:$0xff]
      %v579 = vld [vmem:[%s576 + $0x10] sm:$0xff]
      %v580 = vld [vmem:[%s576 + $0x18] sm:$0xff]
      %v581 = vmul.f32 %v572, %v577
      %v582 = vmul.f32 %v574, %v578
      %v583 = vmul.f32 %v573, %v579
      %v584 = vmul.f32 %v575, %v580
      %v585 = vadd.f32 %v559, %v581
      %v586 = vadd.f32 %v560, %v582
      %v587 = vadd.f32 %v561, %v583
      %v588 = vadd.f32 %v562, %v584
      %589 = vrot.lane.b32.xlu0 %v389, 111
      %v590 = vpop.permute.xlu0 %589
      %591 = vrot.lane.b32.xlu0 %v391, 111
      %v592 = vpop.permute.xlu0 %591
      %593 = vrot.lane.b32.xlu0 %v390, 111
      %v594 = vpop.permute.xlu0 %593
      %595 = vrot.lane.b32.xlu0 %v392, 111
      %v596 = vpop.permute.xlu0 %595
      %vm597 = vcmp.lt.s32.totalorder %v402, 111
      %v598 = vsel %vm597, %v590, %v594
      %v599 = vsel %vm597, %v592, %v596
      %v600 = vsel %vm597, %v594, %v590
      %v601 = vsel %vm597, %v596, %v592
      %s602 = scalar_lea.vmem %s3, 256
      %v603 = vld [vmem:[%s602] sm:$0xff]
      %v604 = vld [vmem:[%s602 + $0x8] sm:$0xff]
      %v605 = vld [vmem:[%s602 + $0x10] sm:$0xff]
      %v606 = vld [vmem:[%s602 + $0x18] sm:$0xff]
      %v607 = vmul.f32 %v598, %v603
      %v608 = vmul.f32 %v600, %v604
      %v609 = vmul.f32 %v599, %v605
      %v610 = vmul.f32 %v601, %v606
      %v611 = vadd.f32 %v585, %v607
      %v612 = vadd.f32 %v586, %v608
      %v613 = vadd.f32 %v587, %v609
      %v614 = vadd.f32 %v588, %v610
      %v615 = vld [vmem:[%s4] sm:$0xff]
      %v616 = vld [vmem:[%s4 + $0x8] sm:$0xff]
      %618 = vset.pattern.permute.xlu0 0
      %619 = vperm.xlu0 %618, %v615
      %v620 = vpop.permute.xlu0 %619
      %623 = vset.pattern.permute.xlu0 0
      %624 = vperm.xlu0 %623, %v616
      %v625 = vpop.permute.xlu0 %624
      %v627 = vadd.f32 %v611, %v620
      %v628 = vadd.f32 %v612, %v620
      %v629 = vadd.f32 %v613, %v625
      %v630 = vadd.f32 %v614, %v625
      %v631 = vmax.f32 %v627, 0.0
      %v632 = vmax.f32 %v628, 0.0
      %v633 = vmax.f32 %v629, 0.0
      %v634 = vmax.f32 %v630, 0.0
      %v635 = vmin.f32 %v631, 6.0
      %v636 = vmin.f32 %v632, 6.0
      %v637 = vmin.f32 %v633, 6.0
      %v638 = vmin.f32 %v634, 6.0
      %v639 = vld [vmem:[%s5] sm:$0xf]
      %v640 = vld [vmem:[%s6] sm:$0xf]
      %642 = vset.pattern.permute.xlu0 0
      %643 = vperm.xlu0 %642, %v640
      %v644 = vpop.permute.xlu0 %643
      %vm646 = vcmask 130048
      %v648 = vsel %vm646, %v639, 0
      %650 = vmatprep.subr.mxu0 %v636
      %651 = vmatpush1.msra.mxu0 %v635
      %652 = vmatprep.subr.mxu0 %v638
      %653 = vmatpush1.msra.mxu0 %v637
      %654 = vmatprep.subr.mxu0 0.0
      %655 = vmatpush1.msra.mxu0 0.0
      %656 = vmatprep.subr.mxu0 0.0
      %657 = vmatpush1.msra.mxu0 0.0
      %658 = vmatprep.subr.mxu0 0.0
      %659 = vmatpush1.msra.mxu0 0.0
      %660 = vmatprep.subr.mxu0 0.0
      %661 = vmatpush1.msra.mxu0 0.0
      %662 = vmatprep.subr.mxu0 0.0
      %663 = vmatpush1.msra.mxu0 0.0
      %664 = vmatprep.subr.mxu0 0.0
      %665 = vmatpush1.msra.mxu0 0.0
      %666 = vmatprep.subr.mxu0 0.0
      %667 = vmatpush1.msra.mxu0 0.0
      %668 = vmatprep.subr.mxu0 0.0
      %669 = vmatpush1.msra.mxu0 0.0
      %670 = vmatprep.subr.mxu0 0.0
      %671 = vmatpush1.msra.mxu0 0.0
      %672 = vmatprep.subr.mxu0 0.0
      %673 = vmatpush1.msra.mxu0 0.0
      %674 = vmatprep.subr.mxu0 0.0
      %675 = vmatpush1.msra.mxu0 0.0
      %676 = vmatprep.subr.mxu0 0.0
      %677 = vmatpush1.msra.mxu0 0.0
      %678 = vmatprep.subr.mxu0 0.0
      %679 = vmatpush1.msra.mxu0 0.0
      %680 = vmatprep.subr.mxu0 0.0
      %681 = vmatpush1.msra.mxu0 0.0
      %682 = vmatprep.subr.mxu0 0.0
      %683 = vmatpush1.msra.mxu0 0.0
      %684 = vmatprep.subr.mxu0 0.0
      %685 = vmatpush1.msra.mxu0 0.0
      %686 = vmatprep.subr.mxu0 0.0
      %687 = vmatpush1.msra.mxu0 0.0
      %688 = vmatprep.subr.mxu0 0.0
      %689 = vmatpush1.msra.mxu0 0.0
      %690 = vmatprep.subr.mxu0 0.0
      %691 = vmatpush1.msra.mxu0 0.0
      %692 = vmatprep.subr.mxu0 0.0
      %693 = vmatpush1.msra.mxu0 0.0
      %694 = vmatprep.subr.mxu0 0.0
      %695 = vmatpush1.msra.mxu0 0.0
      %696 = vmatprep.subr.mxu0 0.0
      %697 = vmatpush1.msra.mxu0 0.0
      %698 = vmatprep.subr.mxu0 0.0
      %699 = vmatpush1.msra.mxu0 0.0
      %700 = vmatprep.subr.mxu0 0.0
      %701 = vmatpush1.msra.mxu0 0.0
      %702 = vmatprep.subr.mxu0 0.0
      %703 = vmatpush1.msra.mxu0 0.0
      %704 = vmatprep.subr.mxu0 0.0
      %705 = vmatpush1.msra.mxu0 0.0
      %706 = vmatprep.subr.mxu0 0.0
      %707 = vmatpush1.msra.mxu0 0.0
      %708 = vmatprep.subr.mxu0 0.0
      %709 = vmatpush1.msra.mxu0 0.0
      %710 = vmatprep.subr.mxu0 0.0
      %711 = vmatpush1.msra.mxu0 0.0
      %712 = vmatprep.subr.mxu0 0.0
      %713 = vmatpush1.msra.mxu0 0.0
      %714 = vmatprep.mubr.f32.mxu0 0.0
      %715 = vmatmul.mubr.f32.gmra.mrb[0].mxu0 %v648
      %v716 = vpop.f32.mrb[0].mxu0
      %v717 = vadd.f32 %v644, %v716
      %v718 = vpop.f32.mrb[0].mxu0
      %v719 = vadd.f32 %v644, %v718
      %720 = vdwg.mxu0
      %v722 = vadd.f32 %v717, %v279
      %v723 = vadd.f32 %v719, %v295
      %v726 = vcombine.low %v722, %v723
      %728 = vst [vmem:[%s278] sm:$0xff] %v726
      %p729 = scmp.lt.s32.totalorder %s18, 1
      %s730 = scalar_select %p729, %s18, 1
      %s731 = smul.addr %s730, 2
      %s732 = smul.addr %s731, 4
      %s733 = scalar_lea.vmem %s7, %s732
      // Predicated region
      $region49: #{inverted_residual.1} parent=47 // pred_check
        %p734 = pneg %p188
      $region50: #{inverted_residual.1} parent=47 // pred_check_branch
        %736 = sbr.rel (%p734) target = $region52
      $region51: #{inverted_residual.1} parent=47 // pred_region
        _
      $region52: #{inverted_residual.1} parent=47 // pred_fallthru
        _
    $region48: #{inverted_residual.1} parent=5 // pred_fallthru
      _
    %p737 = scmp.le.s32.totalorder 2, %s13
    // Predicated region
    $region53: #{inverted_residual.1} parent=5 // pred_check
      %p738 = pneg %p737
    $region54: #{inverted_residual.1} parent=5 // pred_check_branch
      %740 = sbr.rel (%p738) target = $region56
    $region55: #{inverted_residual.1} parent=5 // pred_region
      %s741 = ssub.s32 %s13, 2
      // Predicated region
      $region57: #{inverted_residual.1} parent=55 // pred_check
        %p742 = pneg %p194
      $region58: #{inverted_residual.1} parent=55 // pred_check_branch
        %744 = sbr.rel (%p742) target = $region60
      $region59: #{inverted_residual.1} parent=55 // pred_region
        %p745 = scmp.lt.s32.totalorder %s19, 1
        %s746 = scalar_select %p745, %s19, 1
        %s747 = smul.addr %s746, 2
        %s748 = smul.addr %s747, 4
        %s749 = scalar_lea.vmem %s7, %s748
      $region60: #{inverted_residual.1} parent=55 // pred_fallthru
        _
    $region56: #{inverted_residual.1} parent=5 // pred_fallthru
      _
  $region6: #{inverted_residual.1} parent=0 // loop_footer
    %s17 = sadd.s32 1, %s13
  $region7: #{inverted_residual.1} parent=0 // loop_footer_branch
    %12 = sbr.rel target = $region3
  $region8: #{inverted_residual.1} parent=0 // loop_exit
    _

</llo_original>
